<compile_context>
chip_gen: v5e
topology: v5e:2x2
jax: 0.10.0
libtpu: 0.0.40
codegen_flags: <defaults>
</compile_context>

<pallas_src>
import functools

import jax
import jax.numpy as jnp
from jax.experimental import pallas as pl
from jax.experimental.pallas import tpu as pltpu


def _round_up(x: int, m: int) -> int:
    return ((x + m - 1) // m) * m


def _fused_step_kernel(x_ref, w_ref, b_ref, o_ref):
    # One grid step == one fused row-tile of the original per-batch step() loop.
    # x_ref: (tm, Hp) bf16, w_ref: (Hp, Op) bf16 (resident),
    # b_ref: (1, Op) f32 (resident), o_ref: (tm, Op) f32.
    y = jnp.dot(x_ref[...], w_ref[...], preferred_element_type=jnp.float32)
    # Bias add / epilogue kept in f32 (no bf16 VPU work; v5e-safe).
    o_ref[...] = (y + b_ref[...]).astype(o_ref.dtype)


@functools.partial(jax.jit, static_argnames=("tm", "split_outputs"))
def _forward_impl(input_x, w, b, *, tm: int, split_outputs: bool):
    N, B, H = input_x.shape
    O = w.shape[1]
    M = N * B

    # ---- fuse N*B and pad to MXU/lane-friendly shapes -----------------------
    Hp = _round_up(H, 128)            # lane-dense K
    Op = _round_up(O, 128)            # lane-dense output (unmasked vst)
    tile_m = min(tm, _round_up(M, 8)) # row tile, multiple of 8 sublanes
    Mp = _round_up(M, tile_m)

    x2 = input_x.reshape(M, H)
    x_p = jnp.pad(x2, ((0, Mp - M), (0, Hp - H))).astype(jnp.bfloat16)
    w_p = jnp.pad(w, ((0, Hp - H), (0, Op - O))).astype(jnp.bfloat16)
    b_p = jnp.pad(b, ((0, 0), (0, Op - O)))  # stays f32

    grid_m = Mp // tile_m

    cost = pl.CostEstimate(
        flops=2 * Mp * Hp * Op,
        transcendentals=0,
        bytes_accessed=(x_p.size * 2 + w_p.size * 2 + b_p.size * 4
                        + Mp * Op * 4),
    )

    out_padded = pl.pallas_call(
        _fused_step_kernel,
        out_shape=jax.ShapeDtypeStruct((Mp, Op), jnp.float32),
        grid_spec=pltpu.PrefetchScalarGridSpec(
            num_scalar_prefetch=0,
            grid=(grid_m,),
            in_specs=[
                # streamed row tile of fused (N*B) rows
                pl.BlockSpec((tile_m, Hp), lambda i: (i, 0)),
                # weights / bias resident for every grid step
                pl.BlockSpec((Hp, Op), lambda i: (0, 0)),
                pl.BlockSpec((1, Op), lambda i: (0, 0)),
            ],
            out_specs=pl.BlockSpec((tile_m, Op), lambda i: (i, 0)),
        ),
        compiler_params=pltpu.CompilerParams(
            # Row tiles are independent: shard across TCs on v7x; no-op on v5e/v6e.
            dimension_semantics=("parallel",),
        ),
        cost_estimate=cost,
    )(x_p, w_p, b_p)

    out = out_padded[:M, :O].reshape(N, B, O).astype(input_x.dtype)
    return out


def base_inference_forward(input_x, w, b, *, tm=256, split_outputs=False):
    """Mirrors BaseInference.forward: returns (outputs, results).

    input_x: [N, B, H] float32   (N = batches iterated by forward)
    w:       [H, O]    float32
    b:       [1, O]    float32

    `outputs` is the stacked (N, B, O) prediction array (one entry per
    `step(x)` call along axis 0); pass split_outputs=True to get the original
    per-batch Python list.  The base-class `step` returns a bare tensor, so
    `results` is always {}.
    """
    out = _forward_impl(input_x, w, b, tm=tm, split_outputs=split_outputs)
    outputs = [out[i] for i in range(out.shape[0])] if split_outputs else out
    results = {}
    # TODO(synk): Progress-bar logging (pbar.log/step/finalise) has no Pallas
    # equivalent and is intentionally omitted.
    return outputs, results


if __name__ == "__main__":
    key = jax.random.PRNGKey(0)
    N, B, H, O = 4, 8, 32, 32  # small shapes consistent with the forward loop

    kx, kw, kb = jax.random.split(key, 3)
    input_x = jax.random.normal(kx, (N, B, H), dtype=jnp.float32)
    # Deterministic synthetic parameters for the stand-in `step` head.
    w = jax.random.normal(kw, (H, O), dtype=jnp.float32) * 0.05
    b = jax.random.normal(kb, (1, O), dtype=jnp.float32) * 0.01

    outputs, results = base_inference_forward(input_x, w, b)
    jax.block_until_ready(outputs)

    # Reference: same bf16 rounding of operands, f32 accumulation + f32 bias.
    x_bf = input_x.astype(jnp.bfloat16).astype(jnp.float32)
    w_bf = w.astype(jnp.bfloat16).astype(jnp.float32)
    ref = jnp.einsum("nbh,ho->nbo", x_bf, w_bf) + b[None]
    assert outputs.shape == (N, B, O)
    assert jnp.allclose(outputs, ref, atol=1e-3, rtol=1e-3), "mismatch vs reference"
    assert results == {}

    # list-mode path still works (original forward() semantics)
    outputs_list, _ = base_inference_forward(input_x, w, b, split_outputs=True)
    jax.block_until_ready(outputs_list)
    assert len(outputs_list) == N

    print("KERNEL_OK")
</pallas_src>

<mosaic_0001>
module attributes {stable_mosaic.version = 11 : i64} {
  func.func @_fused_step_kernel(%arg0: i32, %arg1: memref<32x128xbf16, #tpu.memory_space<vmem>>, %arg2: memref<128x128xbf16, #tpu.memory_space<vmem>>, %arg3: memref<1x128xf32, #tpu.memory_space<vmem>>, %arg4: memref<32x128xf32, #tpu.memory_space<vmem>>) attributes {dimension_semantics = [#tpu.dimension_semantics<parallel>], iteration_bounds = array<i64: 1>, scalar_prefetch = 0 : i64, scratch_operands = 0 : i64, tpu.core_type = #tpu.core_type<tc>, window_params = [{transform_indices = @transform_0, window_bounds = array<i64: 32, 128>}, {pipeline_mode = #tpu.pipeline_mode<synchronous>, transform_indices = @transform_1, window_bounds = array<i64: 128, 128>}, {pipeline_mode = #tpu.pipeline_mode<synchronous>, transform_indices = @transform_2, window_bounds = array<i64: 1, 128>}, {transform_indices = @transform_3, window_bounds = array<i64: 32, 128>}]} {
    %c0 = arith.constant 0 : index
    %c0_0 = arith.constant 0 : index
    %0 = vector.load %arg1[%c0, %c0_0] : memref<32x128xbf16, #tpu.memory_space<vmem>>, vector<32x128xbf16>
    %c0_1 = arith.constant 0 : index
    %c0_2 = arith.constant 0 : index
    %1 = vector.load %arg2[%c0_1, %c0_2] : memref<128x128xbf16, #tpu.memory_space<vmem>>, vector<128x128xbf16>
    %cst = arith.constant dense<0.000000e+00> : vector<32x128xf32>
    %2 = tpu.matmul %0, %1, %cst {dimension_numbers = #tpu.dot_dimension_numbers<[1], [0], [0], [1], [0, 0, 1, 1], [], []>} : vector<32x128xbf16>, vector<128x128xbf16>, vector<32x128xf32> -> vector<32x128xf32>
    %c0_3 = arith.constant 0 : index
    %c0_4 = arith.constant 0 : index
    %3 = vector.load %arg3[%c0_3, %c0_4] : memref<1x128xf32, #tpu.memory_space<vmem>>, vector<1x128xf32>
    %4 = vector.broadcast %3 : vector<1x128xf32> to vector<32x128xf32>
    %5 = arith.addf %2, %4 : vector<32x128xf32>
    %c0_5 = arith.constant 0 : index
    %c0_6 = arith.constant 0 : index
    %6 = vector.load %arg4[%c0_5, %c0_6] : memref<32x128xf32, #tpu.memory_space<vmem>>, vector<32x128xf32>
    tpu.vector_store %arg4[%c0_5, %c0_6], %5 {strides = array<i32>} : memref<32x128xf32, #tpu.memory_space<vmem>>, vector<32x128xf32>,
    return
  }
  func.func @transform_0(%arg0: i32) -> (i32, i32) {
    %c0_i32 = arith.constant 0 : i32
    %c0_i32_0 = arith.constant 0 : i32
    return %arg0, %c0_i32 : i32, i32
  }
  func.func @transform_1(%arg0: i32) -> (i32, i32) {
    %c0_i32 = arith.constant 0 : i32
    %c0_i32_0 = arith.constant 0 : i32
    %c0_i32_1 = arith.constant 0 : i32
    return %c0_i32, %c0_i32_0 : i32, i32
  }
  func.func @transform_2(%arg0: i32) -> (i32, i32) {
    %c0_i32 = arith.constant 0 : i32
    %c0_i32_0 = arith.constant 0 : i32
    %c0_i32_1 = arith.constant 0 : i32
    return %c0_i32, %c0_i32_0 : i32, i32
  }
  func.func @transform_3(%arg0: i32) -> (i32, i32) {
    %c0_i32 = arith.constant 0 : i32
    %c0_i32_0 = arith.constant 0 : i32
    return %arg0, %c0_i32 : i32, i32
  }
}

</mosaic_0001>

<llo_original>
// kernel: _forward_impl.1
$region0: #{_forward_impl.1}
  #allocation0 [shape = 'u32[]', space=smem, size = 0x4, offset = 0x4, fixed_abs, tag = 'smem constant byte address 0x4 - core index']
  #allocation1 [shape = 'u32[72,128]{1,0:T(1,128)}', space=vmem, size = 0x9000, scoped, tag = 'internal scratch']
  %s0 = inlined_call_operand.vmem [shape: bf16[32,128], index: 0, kind: input, shape index: {}]
  %s1 = inlined_call_operand.vmem [shape: bf16[128,128], index: 1, kind: input, shape index: {}]
  %s2 = inlined_call_operand.vmem [shape: f32[1,128], index: 2, kind: input, shape index: {}]
  %s3 = inlined_call_operand.vmem [shape: f32[32,128], index: 3, kind: output, shape index: {}]
  %s4 = sld [smem:[#allocation0]]
  $region22: #{_forward_impl.1} parent=0
    _
  %s6 = ssub.s32 1, %s4
  %s7 = scalar_select 0, %s6, %s4
  // Predicated region
  $region2: #{_forward_impl.1} parent=0 // pred_check
    _
  $region3: #{_forward_impl.1} parent=0 // pred_check_branch
    %9 = sbr.rel (0) target = $region5
  $region4: #{_forward_impl.1} parent=0 // pred_region
    _
  $region5: #{_forward_impl.1} parent=0 // pred_fallthru
    _
  // Predicated region
  $region6: #{_forward_impl.1} parent=0 // pred_check
    _
  $region7: #{_forward_impl.1} parent=0 // pred_check_branch
    %11 = sbr.rel (0) target = $region9
  $region8: #{_forward_impl.1} parent=0 // pred_region
    _
  $region9: #{_forward_impl.1} parent=0 // pred_fallthru
    _
  // Predicated region
  $region10: #{_forward_impl.1} parent=0 // pred_check
    _
  $region11: #{_forward_impl.1} parent=0 // pred_check_branch
    %13 = sbr.rel (0) target = $region13
  $region12: #{_forward_impl.1} parent=0 // pred_region
    _
  $region13: #{_forward_impl.1} parent=0 // pred_fallthru
    _
  %v14 = vld [vmem:[%s0] sm:$0xf]
  %v15 = vld [vmem:[%s0 + $0x4] sm:$0xf]
  %v16 = vld [vmem:[%s0 + $0x8] sm:$0xf]
  %v17 = vld [vmem:[%s0 + $0xc] sm:$0xf]
  %v18 = vld [vmem:[%s1] sm:$0xf]
  %v19 = vld [vmem:[%s1 + $0x4] sm:$0xf]
  %v20 = vld [vmem:[%s1 + $0x8] sm:$0xf]
  %v21 = vld [vmem:[%s1 + $0xc] sm:$0xf]
  %v22 = vld [vmem:[%s1 + $0x10] sm:$0xf]
  %v23 = vld [vmem:[%s1 + $0x14] sm:$0xf]
  %v24 = vld [vmem:[%s1 + $0x18] sm:$0xf]
  %v25 = vld [vmem:[%s1 + $0x1c] sm:$0xf]
  %v26 = vld [vmem:[%s1 + $0x20] sm:$0xf]
  %v27 = vld [vmem:[%s1 + $0x24] sm:$0xf]
  %v28 = vld [vmem:[%s1 + $0x28] sm:$0xf]
  %v29 = vld [vmem:[%s1 + $0x2c] sm:$0xf]
  %v30 = vld [vmem:[%s1 + $0x30] sm:$0xf]
  %v31 = vld [vmem:[%s1 + $0x34] sm:$0xf]
  %v32 = vld [vmem:[%s1 + $0x38] sm:$0xf]
  %v33 = vld [vmem:[%s1 + $0x3c] sm:$0xf]
  %v34 = vld [vmem:[%s2] sm:$0x1]
  %v36 = vperm.slane %v34, 0
  %v42 = vunpack.c.l.b16 %v14
  %v43 = vunpack.c.l.b16 %v15
  %v44 = vunpack.c.l.b16 %v16
  %v45 = vunpack.c.l.b16 %v17
  %v46 = vpack.c.b16 %v43, %v42
  %v47 = vpack.c.b16 %v45, %v44
  %v66 = vunpack.c.l.b16 %v18
  %v67 = vunpack.c.l.b16 %v19
  %v68 = vunpack.c.l.b16 %v20
  %v69 = vunpack.c.l.b16 %v21
  %v70 = vunpack.c.l.b16 %v22
  %v71 = vunpack.c.l.b16 %v23
  %v72 = vunpack.c.l.b16 %v24
  %v73 = vunpack.c.l.b16 %v25
  %v74 = vunpack.c.l.b16 %v26
  %v75 = vunpack.c.l.b16 %v27
  %v76 = vunpack.c.l.b16 %v28
  %v77 = vunpack.c.l.b16 %v29
  %v78 = vunpack.c.l.b16 %v30
  %v79 = vunpack.c.l.b16 %v31
  %v80 = vunpack.c.l.b16 %v32
  %v81 = vunpack.c.l.b16 %v33
  %v82 = vpack.c.b16 %v67, %v66
  %v83 = vpack.c.b16 %v69, %v68
  %v84 = vpack.c.b16 %v71, %v70
  %v85 = vpack.c.b16 %v73, %v72
  %v86 = vpack.c.b16 %v75, %v74
  %v87 = vpack.c.b16 %v77, %v76
  %v88 = vpack.c.b16 %v79, %v78
  %v89 = vpack.c.b16 %v81, %v80
  %98 = vmatpush.bf16.msra.mxu0 %v89
  %99 = vmatpush.bf16.msra.mxu0 %v88
  %100 = vmatpush.bf16.msra.mxu0 %v87
  %101 = vmatpush.bf16.msra.mxu0 %v86
  %102 = vmatpush.bf16.msra.mxu0 %v85
  %103 = vmatpush.bf16.msra.mxu0 %v84
  %104 = vmatpush.bf16.msra.mxu0 %v83
  %105 = vmatpush.bf16.msra.mxu0 %v82
  %106 = vmatmul.bf16.gmra.mxu0 %v46
  %v107 = vpop.f32.mrf.mxu0
  %v108 = vadd.f32 %v36, %v107
  %v109 = vpop.f32.mrf.mxu0
  %v110 = vadd.f32 %v36, %v109
  %111 = vmatmul.bf16.gmra.mxu0 %v47
  %v112 = vpop.f32.mrf.mxu0
  %v113 = vadd.f32 %v36, %v112
  %v114 = vpop.f32.mrf.mxu0
  %v115 = vadd.f32 %v36, %v114
  %116 = vdwg.mxu0
  %117 = vst [vmem:[%s3] sm:$0xff] %v108
  %118 = vst [vmem:[%s3 + $0x8] sm:$0xff] %v110
  %119 = vst [vmem:[%s3 + $0x10] sm:$0xff] %v113
  %120 = vst [vmem:[%s3 + $0x18] sm:$0xff] %v115
  // Predicated region
  $region14: #{_forward_impl.1} parent=0 // pred_check
    _
  $region15: #{_forward_impl.1} parent=0 // pred_check_branch
    %122 = sbr.rel (0) target = $region17
  $region16: #{_forward_impl.1} parent=0 // pred_region
    _
  $region17: #{_forward_impl.1} parent=0 // pred_fallthru
    _
  // Predicated region
  $region18: #{_forward_impl.1} parent=0 // pred_check
    _
  $region19: #{_forward_impl.1} parent=0 // pred_check_branch
    %124 = sbr.rel (0) target = $region21
  $region20: #{_forward_impl.1} parent=0 // pred_region
    _
  $region21: #{_forward_impl.1} parent=0 // pred_fallthru
    _

</llo_original>
